<compile_context>
chip_gen: v7x
topology: tpu7x:2x2x1
jax: 0.10.0
libtpu: 0.0.40
codegen_flags: <defaults>
</compile_context>

<pallas_src>
import functools

import jax
import jax.numpy as jnp
from jax import lax
from jax.experimental import pallas as pl
from jax.experimental.pallas import tpu as pltpu

HALO = 128  # lane-aligned halo columns read from the next tile; requires (K-1)*dilation <= HALO


def _apply_activation(y, activation):
    if activation == "relu":
        return jnp.maximum(y, 0.0)
    if activation == "tanh":
        return jnp.tanh(y)
    if activation == "sigmoid":
        return jax.nn.sigmoid(y)
    return y  # 'identity'


def _conv_stats_kernel(x_ref, xh_ref, w_ref, y_ref, sum_ref, sq_ref, *,
                       kernel, dilation, tile_l, lp, out_len):
    """Conv1d taps as lane-dense MXU matmuls + one-pass per-channel sum / sum-of-squares."""
    j = pl.program_id(0)

    # Current tile plus its right halo (both already bf16).
    xwin = jnp.concatenate([x_ref[...], xh_ref[...]], axis=-1)   # (Cin, tile_l + HALO)

    cout = w_ref.shape[1]
    acc = jnp.zeros((cout, tile_l), jnp.float32)
    for k in range(kernel):                                      # K is small & static -> unrolled
        wk = w_ref[k]                                            # (Cout, Cin) bf16
        xs = xwin[:, k * dilation:k * dilation + tile_l]         # (Cin, tile_l) bf16
        acc = acc + jnp.dot(wk, xs, preferred_element_type=jnp.float32)

    # Validity mask: flat position s belongs to a real output iff (s mod Lp) < out_len.
    # (Gap columns between samples are contaminated; pure tail padding is zero anyway.)
    pos = j * tile_l + lax.broadcasted_iota(jnp.int32, (1, tile_l), 1)
    valid = (pos % lp) < out_len
    masked = jnp.where(valid, acc, 0.0)

    # P3 accumulator pattern: (Cout, 1) stats outputs stay resident across the grid axis.
    @pl.when(j == 0)
    def _():
        sum_ref[...] = jnp.zeros_like(sum_ref)
        sq_ref[...] = jnp.zeros_like(sq_ref)

    sum_ref[...] += jnp.sum(masked, axis=-1, keepdims=True)
    sq_ref[...] += jnp.sum(masked * masked, axis=-1, keepdims=True)

    y_ref[...] = acc.astype(y_ref.dtype)


def _bn_act_kernel(y_ref, scale_ref, shift_ref, o_ref, *, activation):
    """Fused BN affine (scale/shift) + activation; dropout p=0.0 is identity."""
    y = y_ref[...] * scale_ref[...] + shift_ref[...]
    o_ref[...] = _apply_activation(y, activation).astype(o_ref.dtype)


def conv_block(x, weight, gamma, beta, *, kernel, dilation=1, eps=1e-5,
               activation="identity", tile_l=512):
    """x: (N, Cin, L) channel-first; weight: (Cout, Cin, K); gamma/beta: (Cout,)."""
    N, Cin, L = x.shape
    Cout, wcin, K = weight.shape
    assert wcin == Cin and K == kernel
    assert (kernel - 1) * dilation <= HALO, "kernel footprint must fit in one halo block"
    assert tile_l % HALO == 0, "tile_l must be a multiple of 128 for lane-dense blocks"

    # 'same' padding exactly as the PyTorch module computes it.
    p = (kernel - 1) * dilation // 2
    pad = (p, p) if kernel % 2 != 0 else (p, p + 1)
    Lp = L + pad[0] + pad[1]
    out_len = Lp - (kernel - 1) * dilation

    # Lane-dense relayout (one XLA pass, fused): (N, Cin, L) -> (Cin, N*Lp), bf16 for the MXU.
    xpad = jnp.pad(x, ((0, 0), (0, 0), pad))
    x_flat = jnp.transpose(xpad, (1, 0, 2)).reshape(Cin, N * Lp)

    num_tiles = (N * Lp + tile_l - 1) // tile_l
    lflat = num_tiles * tile_l
    x_flat = jnp.pad(x_flat, ((0, 0), (0, lflat + HALO - N * Lp))).astype(jnp.bfloat16)

    w_t = jnp.transpose(weight, (2, 0, 1)).astype(jnp.bfloat16)      # (K, Cout, Cin)

    # ---- Pass 1: conv + per-channel sum / sumsq (grid axis is a stats reduction -> arbitrary) ----
    conv_kern = functools.partial(
        _conv_stats_kernel, kernel=kernel, dilation=dilation,
        tile_l=tile_l, lp=Lp, out_len=out_len)
    y_flat, s, sq = pl.pallas_call(
        conv_kern,
        out_shape=(
            jax.ShapeDtypeStruct((Cout, lflat), jnp.float32),
            jax.ShapeDtypeStruct((Cout, 1), jnp.float32),
            jax.ShapeDtypeStruct((Cout, 1), jnp.float32),
        ),
        grid=(num_tiles,),
        in_specs=[
            pl.BlockSpec((Cin, tile_l), lambda j: (0, j)),                        # current tile
            pl.BlockSpec((Cin, HALO), lambda j: (0, (j + 1) * (tile_l // HALO))),  # right halo
            pl.BlockSpec((kernel, Cout, Cin), lambda j: (0, 0, 0)),               # weights
        ],
        out_specs=(
            pl.BlockSpec((Cout, tile_l), lambda j: (0, j)),
            pl.BlockSpec((Cout, 1), lambda j: (0, 0)),
            pl.BlockSpec((Cout, 1), lambda j: (0, 0)),
        ),
        compiler_params=pltpu.CompilerParams(dimension_semantics=("arbitrary",)),
    )(x_flat, x_flat, w_t)

    # ---- Tiny (Cout,)-sized BN math in the wrapper: fold BN into a per-channel affine ----
    count = jnp.float32(N * out_len)
    mean = s / count
    var = jnp.maximum(sq / count - mean * mean, 0.0)     # biased variance (training-mode BN)
    scale = gamma.reshape(Cout, 1).astype(jnp.float32) * lax.rsqrt(var + eps)
    shift = beta.reshape(Cout, 1).astype(jnp.float32) - mean * scale

    # ---- Pass 2: fused BN-affine + activation, fully parallel over tiles (megacore on v7x) ----
    bn_kern = functools.partial(_bn_act_kernel, activation=activation)
    out_flat = pl.pallas_call(
        bn_kern,
        out_shape=jax.ShapeDtypeStruct((Cout, lflat), x.dtype),
        grid=(num_tiles,),
        in_specs=[
            pl.BlockSpec((Cout, tile_l), lambda j: (0, j)),
            pl.BlockSpec((Cout, 1), lambda j: (0, 0)),
            pl.BlockSpec((Cout, 1), lambda j: (0, 0)),
        ],
        out_specs=pl.BlockSpec((Cout, tile_l), lambda j: (0, j)),
        compiler_params=pltpu.CompilerParams(dimension_semantics=("parallel",)),
    )(y_flat, scale, shift)

    # Drop gap/tail columns and return channel-first (N, Cout, out_len).
    out = out_flat[:, :N * Lp].reshape(Cout, N, Lp)[:, :, :out_len]
    return jnp.transpose(out, (1, 0, 2))


def conv_block_reference(x, weight, gamma, beta, *, kernel, dilation=1, eps=1e-5,
                         activation="identity"):
    """Pure-JAX (f32) reference matching the PyTorch ConvBlock forward (training-mode BN, p=0)."""
    p = (kernel - 1) * dilation // 2
    pad = (p, p) if kernel % 2 != 0 else (p, p + 1)
    y = jax.lax.conv_general_dilated(
        x, weight, window_strides=(1,), padding=[pad],
        rhs_dilation=(dilation,), dimension_numbers=("NCH", "OIH", "NCH"))
    mean = y.mean(axis=(0, 2), keepdims=True)
    var = ((y - mean) ** 2).mean(axis=(0, 2), keepdims=True)
    y = (y - mean) / jnp.sqrt(var + eps) * gamma[None, :, None] + beta[None, :, None]
    return _apply_activation(y, activation)


if __name__ == "__main__":
    # Small shapes consistent with the module's forward: (batch, channels, seq).
    # L chosen so the fused N*Lp axis spans multiple 512-wide tiles (exercises the grid).
    N, Cin, Cout, L, K = 2, 8, 16, 600, 3

    key = jax.random.PRNGKey(0)
    kx, kw, kg, kb = jax.random.split(key, 4)
    x = jax.random.normal(kx, (N, Cin, L), dtype=jnp.float32)
    weight = jax.random.normal(kw, (Cout, Cin, K), dtype=jnp.float32) * 0.1
    # PyTorch BatchNorm1d inits weight=1, bias=0; perturb slightly for a non-trivial test.
    gamma = 1.0 + 0.1 * jax.random.normal(kg, (Cout,), dtype=jnp.float32)
    beta = 0.1 * jax.random.normal(kb, (Cout,), dtype=jnp.float32)

    out = conv_block(x, weight, gamma, beta, kernel=K, dilation=1, activation="relu")
    out = jax.block_until_ready(out)

    ref = conv_block_reference(x, weight, gamma, beta, kernel=K, dilation=1, activation="relu")
    assert out.shape == (N, Cout, L)
    max_err = float(jnp.max(jnp.abs(out - ref)))
    # bf16 MXU operands (f32 accumulation) -> tolerance loosened vs the all-f32 reference.
    assert jnp.allclose(out, ref, atol=3e-2, rtol=3e-2), f"mismatch vs reference (max err {max_err})"

    print("KERNEL_OK")
</pallas_src>

<mosaic_0001>
module attributes {stable_mosaic.version = 11 : i64} {
  func.func @_conv_stats_kernel(%arg0: i32, %arg1: memref<8x512xbf16, #tpu.memory_space<vmem>>, %arg2: memref<8x128xbf16, #tpu.memory_space<vmem>>, %arg3: memref<3x16x8xbf16, #tpu.memory_space<vmem>>, %arg4: memref<16x512xf32, #tpu.memory_space<vmem>>, %arg5: memref<16x1xf32, #tpu.memory_space<vmem>>, %arg6: memref<16x1xf32, #tpu.memory_space<vmem>>) attributes {dimension_semantics = [#tpu.dimension_semantics<arbitrary>], iteration_bounds = array<i64: 3>, scalar_prefetch = 0 : i64, scratch_operands = 0 : i64, tpu.core_type = #tpu.core_type<tc>, window_params = [{transform_indices = @transform_0, window_bounds = array<i64: 8, 512>}, {transform_indices = @transform_1, window_bounds = array<i64: 8, 128>}, {pipeline_mode = #tpu.pipeline_mode<synchronous>, transform_indices = @transform_2, window_bounds = array<i64: 3, 16, 8>}, {transform_indices = @transform_3, window_bounds = array<i64: 16, 512>}, {pipeline_mode = #tpu.pipeline_mode<synchronous>, transform_indices = @transform_4, window_bounds = array<i64: 16, 1>}, {pipeline_mode = #tpu.pipeline_mode<synchronous>, transform_indices = @transform_5, window_bounds = array<i64: 16, 1>}]} {
    %c0 = arith.constant 0 : index
    %c0_0 = arith.constant 0 : index
    %0 = vector.load %arg1[%c0, %c0_0] : memref<8x512xbf16, #tpu.memory_space<vmem>>, vector<8x512xbf16>
    %c0_1 = arith.constant 0 : index
    %c0_2 = arith.constant 0 : index
    %1 = vector.load %arg2[%c0_1, %c0_2] : memref<8x128xbf16, #tpu.memory_space<vmem>>, vector<8x128xbf16>
    %2 = tpu.concatenate %0, %1 in 1 : vector<8x512xbf16>, vector<8x128xbf16> -> vector<8x640xbf16>
    %cst = arith.constant 0.000000e+00 : f32
    %3 = vector.broadcast %cst : f32 to vector<16x512xf32>
    %c0_3 = arith.constant 0 : index
    %c0_4 = arith.constant 0 : index
    %c0_5 = arith.constant 0 : index
    %4 = vector.load %arg3[%c0_3, %c0_4, %c0_5] : memref<3x16x8xbf16, #tpu.memory_space<vmem>>, vector<1x16x8xbf16>
    %5 = vector.shape_cast %4 : vector<1x16x8xbf16> to vector<16x8xbf16>
    %6 = vector.extract_strided_slice %2 {offsets = [0, 0], sizes = [8, 512], strides = [1, 1]} : vector<8x640xbf16> to vector<8x512xbf16>
    %cst_6 = arith.constant dense<0.000000e+00> : vector<16x512xf32>
    %7 = tpu.matmul %5, %6, %cst_6 {dimension_numbers = #tpu.dot_dimension_numbers<[1], [0], [0], [1], [0, 0, 1, 1], [], []>} : vector<16x8xbf16>, vector<8x512xbf16>, vector<16x512xf32> -> vector<16x512xf32>
    %8 = arith.addf %3, %7 : vector<16x512xf32>
    %c1 = arith.constant 1 : index
    %c0_7 = arith.constant 0 : index
    %c0_8 = arith.constant 0 : index
    %9 = vector.load %arg3[%c1, %c0_7, %c0_8] : memref<3x16x8xbf16, #tpu.memory_space<vmem>>, vector<1x16x8xbf16>
    %10 = vector.shape_cast %9 : vector<1x16x8xbf16> to vector<16x8xbf16>
    %11 = vector.extract_strided_slice %2 {offsets = [0, 1], sizes = [8, 512], strides = [1, 1]} : vector<8x640xbf16> to vector<8x512xbf16>
    %cst_9 = arith.constant dense<0.000000e+00> : vector<16x512xf32>
    %12 = tpu.matmul %10, %11, %cst_9 {dimension_numbers = #tpu.dot_dimension_numbers<[1], [0], [0], [1], [0, 0, 1, 1], [], []>} : vector<16x8xbf16>, vector<8x512xbf16>, vector<16x512xf32> -> vector<16x512xf32>
    %13 = arith.addf %8, %12 : vector<16x512xf32>
    %c2 = arith.constant 2 : index
    %c0_10 = arith.constant 0 : index
    %c0_11 = arith.constant 0 : index
    %14 = vector.load %arg3[%c2, %c0_10, %c0_11] : memref<3x16x8xbf16, #tpu.memory_space<vmem>>, vector<1x16x8xbf16>
    %15 = vector.shape_cast %14 : vector<1x16x8xbf16> to vector<16x8xbf16>
    %16 = vector.extract_strided_slice %2 {offsets = [0, 2], sizes = [8, 512], strides = [1, 1]} : vector<8x640xbf16> to vector<8x512xbf16>
    %cst_12 = arith.constant dense<0.000000e+00> : vector<16x512xf32>
    %17 = tpu.matmul %15, %16, %cst_12 {dimension_numbers = #tpu.dot_dimension_numbers<[1], [0], [0], [1], [0, 0, 1, 1], [], []>} : vector<16x8xbf16>, vector<8x512xbf16>, vector<16x512xf32> -> vector<16x512xf32>
    %18 = arith.addf %13, %17 : vector<16x512xf32>
    %c512_i32 = arith.constant 512 : i32
    %19 = arith.muli %arg0, %c512_i32 : i32
    %20 = tpu.iota {dimensions = array<i32: 1>} : vector<1x512xi32>
    %21 = vector.broadcast %19 : i32 to vector<1x512xi32>
    %22 = arith.addi %21, %20 : vector<1x512xi32>
    %c602_i32 = arith.constant 602 : i32
    %c0_i32 = arith.constant 0 : i32
    %23 = arith.cmpi eq, %c602_i32, %c0_i32 : i32
    %c1_i32 = arith.constant 1 : i32
    %24 = arith.select %23, %c1_i32, %c602_i32 : i32
    %25 = vector.broadcast %24 : i32 to vector<1x512xi32>
    %26 = arith.remsi %22, %25 : vector<1x512xi32>
    %c0_i32_13 = arith.constant 0 : i32
    %27 = vector.broadcast %c0_i32_13 : i32 to vector<1x512xi32>
    %28 = arith.cmpi ne, %26, %27 : vector<1x512xi32>
    %c0_i32_14 = arith.constant 0 : i32
    %29 = vector.broadcast %c0_i32_14 : i32 to vector<1x512xi32>
    %30 = arith.cmpi slt, %26, %29 : vector<1x512xi32>
    %c0_i32_15 = arith.constant 0 : i32
    %31 = arith.cmpi slt, %24, %c0_i32_15 : i32
    %32 = vector.broadcast %31 : i1 to vector<1x512xi1>
    %33 = vector.broadcast %32 : vector<1x512xi1> to vector<1x512xi1>
    %34 = arith.xori %30, %33 : vector<1x512xi1>
    %35 = arith.andi %34, %28 : vector<1x512xi1>
    %36 = vector.broadcast %24 : i32 to vector<1x512xi32>
    %37 = arith.addi %26, %36 : vector<1x512xi32>
    %38 = arith.select %35, %37, %26 : vector<1x512xi1>, vector<1x512xi32>
    %c600_i32 = arith.constant 600 : i32
    %39 = vector.broadcast %c600_i32 : i32 to vector<1x512xi32>
    %40 = arith.cmpi slt, %38, %39 : vector<1x512xi32>
    %cst_16 = arith.constant 0.000000e+00 : f32
    %41 = vector.shape_cast %40 : vector<1x512xi1> to vector<1x512xi1>
    %42 = vector.broadcast %41 : vector<1x512xi1> to vector<16x512xi1>
    %43 = vector.broadcast %cst_16 : f32 to vector<16x512xf32>
    %44 = arith.select %42, %18, %43 : vector<16x512xi1>, vector<16x512xf32>
    %c0_i32_17 = arith.constant 0 : i32
    %45 = arith.cmpi eq, %arg0, %c0_i32_17 : i32
    %46 = arith.extui %45 : i1 to i32
    %c0_i32_18 = arith.constant 0 : i32
    %47 = arith.cmpi ne, %46, %c0_i32_18 : i32
    scf.if %47 {
      %cst_31 = arith.constant 0.000000e+00 : f32
      %60 = vector.broadcast %cst_31 : f32 to vector<16x1xf32>
      %c0_32 = arith.constant 0 : index
      %c0_33 = arith.constant 0 : index
      %61 = vector.load %arg5[%c0_32, %c0_33] : memref<16x1xf32, #tpu.memory_space<vmem>>, vector<16x1xf32>
      tpu.vector_store %arg5[%c0_32, %c0_33], %60 {strides = array<i32>} : memref<16x1xf32, #tpu.memory_space<vmem>>, vector<16x1xf32>,
      %cst_34 = arith.constant 0.000000e+00 : f32
      %62 = vector.broadcast %cst_34 : f32 to vector<16x1xf32>
      %c0_35 = arith.constant 0 : index
      %c0_36 = arith.constant 0 : index
      %63 = vector.load %arg6[%c0_35, %c0_36] : memref<16x1xf32, #tpu.memory_space<vmem>>, vector<16x1xf32>
      tpu.vector_store %arg6[%c0_35, %c0_36], %62 {strides = array<i32>} : memref<16x1xf32, #tpu.memory_space<vmem>>, vector<16x1xf32>,
    } else {
    }
    %c0_19 = arith.constant 0 : index
    %c0_20 = arith.constant 0 : index
    %48 = vector.load %arg5[%c0_19, %c0_20] : memref<16x1xf32, #tpu.memory_space<vmem>>, vector<16x1xf32>
    %cst_21 = arith.constant dense<0.000000e+00> : vector<16xf32>
    %49 = vector.multi_reduction <add>, %44, %cst_21 [1] : vector<16x512xf32> to vector<16xf32>
    %50 = vector.shape_cast %49 : vector<16xf32> to vector<16x1xf32>
    %51 = arith.addf %48, %50 : vector<16x1xf32>
    %c0_22 = arith.constant 0 : index
    %c0_23 = arith.constant 0 : index
    %52 = vector.load %arg5[%c0_22, %c0_23] : memref<16x1xf32, #tpu.memory_space<vmem>>, vector<16x1xf32>
    tpu.vector_store %arg5[%c0_22, %c0_23], %51 {strides = array<i32>} : memref<16x1xf32, #tpu.memory_space<vmem>>, vector<16x1xf32>,
    %c0_24 = arith.constant 0 : index
    %c0_25 = arith.constant 0 : index
    %53 = vector.load %arg6[%c0_24, %c0_25] : memref<16x1xf32, #tpu.memory_space<vmem>>, vector<16x1xf32>
    %54 = arith.mulf %44, %44 : vector<16x512xf32>
    %cst_26 = arith.constant dense<0.000000e+00> : vector<16xf32>
    %55 = vector.multi_reduction <add>, %54, %cst_26 [1] : vector<16x512xf32> to vector<16xf32>
    %56 = vector.shape_cast %55 : vector<16xf32> to vector<16x1xf32>
    %57 = arith.addf %53, %56 : vector<16x1xf32>
    %c0_27 = arith.constant 0 : index
    %c0_28 = arith.constant 0 : index
    %58 = vector.load %arg6[%c0_27, %c0_28] : memref<16x1xf32, #tpu.memory_space<vmem>>, vector<16x1xf32>
    tpu.vector_store %arg6[%c0_27, %c0_28], %57 {strides = array<i32>} : memref<16x1xf32, #tpu.memory_space<vmem>>, vector<16x1xf32>,
    %c0_29 = arith.constant 0 : index
    %c0_30 = arith.constant 0 : index
    %59 = vector.load %arg4[%c0_29, %c0_30] : memref<16x512xf32, #tpu.memory_space<vmem>>, vector<16x512xf32>
    tpu.vector_store %arg4[%c0_29, %c0_30], %18 {strides = array<i32>} : memref<16x512xf32, #tpu.memory_space<vmem>>, vector<16x512xf32>,
    return
  }
  func.func @transform_0(%arg0: i32) -> (i32, i32) {
    %c0_i32 = arith.constant 0 : i32
    %c0_i32_0 = arith.constant 0 : i32
    return %c0_i32, %arg0 : i32, i32
  }
  func.func @transform_1(%arg0: i32) -> (i32, i32) {
    %c1_i32 = arith.constant 1 : i32
    %0 = arith.addi %arg0, %c1_i32 : i32
    %c4_i32 = arith.constant 4 : i32
    %1 = arith.muli %0, %c4_i32 : i32
    %c0_i32 = arith.constant 0 : i32
    %c0_i32_0 = arith.constant 0 : i32
    return %c0_i32, %1 : i32, i32
  }
  func.func @transform_2(%arg0: i32) -> (i32, i32, i32) {
    %c0_i32 = arith.constant 0 : i32
    %c0_i32_0 = arith.constant 0 : i32
    %c0_i32_1 = arith.constant 0 : i32
    %c0_i32_2 = arith.constant 0 : i32
    return %c0_i32, %c0_i32_0, %c0_i32_1 : i32, i32, i32
  }
  func.func @transform_3(%arg0: i32) -> (i32, i32) {
    %c0_i32 = arith.constant 0 : i32
    %c0_i32_0 = arith.constant 0 : i32
    return %c0_i32, %arg0 : i32, i32
  }
  func.func @transform_4(%arg0: i32) -> (i32, i32) {
    %c0_i32 = arith.constant 0 : i32
    %c0_i32_0 = arith.constant 0 : i32
    %c0_i32_1 = arith.constant 0 : i32
    return %c0_i32, %c0_i32_0 : i32, i32
  }
  func.func @transform_5(%arg0: i32) -> (i32, i32) {
    %c0_i32 = arith.constant 0 : i32
    %c0_i32_0 = arith.constant 0 : i32
    %c0_i32_1 = arith.constant 0 : i32
    return %c0_i32, %c0_i32_0 : i32, i32
  }
}

</mosaic_0001>

<llo_original>
// kernel: tpu_custom_call.1
$region0: #{tpu_custom_call.1}
  #allocation0 [shape = 'u32[]', space=smem, size = 0x4, offset = 0x4, fixed_abs, tag = 'smem constant byte address 0x4 - core index']
  #allocation1 [shape = 'u32[144,128]{1,0:T(1,128)}', space=vmem, size = 0x12000, scoped, tag = 'internal scratch']
  %s0 = inlined_call_operand.hbm [shape: bf16[8,1664], index: 0, kind: input, shape index: {}]
  %s1 = inlined_call_operand.hbm [shape: bf16[8,1664], index: 1, kind: input, shape index: {}]
  %s2 = inlined_call_operand.vmem [shape: bf16[3,16,8], index: 2, kind: input, shape index: {}]
  %s3 = inlined_call_operand.hbm [shape: f32[16,1536], index: 3, kind: output, shape index: {0}]
  %s4 = inlined_call_operand.vmem [shape: f32[16,1], index: 4, kind: output, shape index: {1}]
  %s5 = inlined_call_operand.vmem [shape: f32[16,1], index: 5, kind: output, shape index: {2}]
  %6 = xla_tuple %s3, %s4, %s5
  %s7 = sld [smem:[#allocation0]]
  $region73: #{tpu_custom_call.1} parent=0
    _
  %s9 = ssub.s32 1, %s7
  %s10 = scalar_select 0, %s9, %s7
  $region1: #{tpu_custom_call.1} parent=0
    #allocation2 [shape = 'u8[16384]{0}', space=vmem, size = 0x4000, scoped, tag = 'input window, operand 0']
    #allocation3 [shape = 's32[2]{0}', space=sflag, size = 0x8, scoped, tag = 'scoped memory for tpu_custom_call.1']
    #allocation4 [shape = 's32[2]{0}', space=sflag, size = 0x8, scoped, tag = 'scoped memory for tpu_custom_call.1']
    #allocation5 [shape = 'u8[4096]{0}', space=vmem, size = 0x1000, scoped, tag = 'input window, operand 1']
    #allocation6 [shape = 's32[2]{0}', space=sflag, size = 0x8, scoped, tag = 'scoped memory for tpu_custom_call.1']
    #allocation7 [shape = 'u8[65536]{0}', space=vmem, size = 0x10000, scoped, tag = 'output window, operand 0']
    %11 = vsyncpa [#allocation3], 0
    %s12 = scalar_lea.sflag [#allocation3], 1
    %13 = vsyncpa %s12, 0
    %14 = vsyncpa [#allocation6], 0
    %s15 = scalar_lea.sflag [#allocation6], 1
    %16 = vsyncpa %s15, 0
    %17 = vsyncpa [#allocation4], 0
    %s18 = scalar_lea.sflag [#allocation4], 1
    %19 = vsyncpa %s18, 0
    loop: start=0, step=1, limit=5
    $region2: #{tpu_custom_call.1} parent=1 // loop_pre_header
      _
    $region3: #{tpu_custom_call.1} parent=1 // loop_header
      %s21 = sphi 0, %s25
      %p22 = scmp.ge.s32.totalorder %s21, 5
      %s31 = sphi 0, %s33
      %s34 = sphi 0, %s31
      %s35 = sphi 0, %s34
      %s51 = sphi 0, %s35
      %s61 = sphi 0, %s63
      %s64 = sphi 0, %s61
      %s65 = sphi 0, %s64
      %s81 = sphi 0, %s65
      %s85 = sphi 0, %s85
      %s87 = sphi 0, %s85
      %s88 = sphi 0, %s87
      %s102 = sphi 0, %s88
      %s108 = sphi 0, %s110
      %s111 = sphi 0, %s108
      %s112 = sphi 0, %s111
      %s128 = sphi 0, %s112
      %s132 = sphi 0, %s132
      %s134 = sphi 0, %s132
      %s135 = sphi 0, %s134
      %s149 = sphi 0, %s135
      %s153 = sphi 0, %s153
      %s155 = sphi 0, %s153
      %s156 = sphi 0, %s155
      %s170 = sphi 0, %s156
    $region4: #{tpu_custom_call.1} parent=1 // loop_header_branch
      %24 = sbr.rel (%p22) target = $region8
    $region5: #{tpu_custom_call.1} parent=1 // loop_body
      %s26 = ssub.s32 %s21, 1
      %s27 = ssub.s32 %s21, 2
      %s28 = sadd.s32 %s21, 1
      %s29 = ssub.s32 %s21, %s28
      %p30 = scmp.eq.s32.totalorder %s29, 0
      %s32 = sadd.s32 %s31, 1
      %s33 = scalar_select %p30, %s31, %s32
      %p36 = pneg %p30
      %p37 = scmp.eq.s32.totalorder %s21, 2
      %p38 = por %p36, %p37
      %p39 = scmp.ne.s32.totalorder %s31, %s34
      %p40 = scmp.eq.s32.totalorder %s21, 0
      %p41 = por %p39, %p40
      %p42 = scmp.ne.s32.totalorder %s31, %s34
      %p43 = scmp.eq.s32.totalorder %s26, 2
      %p44 = por %p42, %p43
      %p45 = scmp.ne.s32.totalorder %s34, %s35
      %p46 = scmp.eq.s32.totalorder %s26, 0
      %p47 = por %p45, %p46
      %p48 = scmp.ne.s32.totalorder %s34, %s35
      %p49 = scmp.eq.s32.totalorder %s27, 2
      %p50 = por %p48, %p49
      %p52 = scmp.ne.s32.totalorder %s35, %s51
      %p53 = scmp.eq.s32.totalorder %s27, 0
      %p54 = por %p52, %p53
      %s55 = sadd.s32 %s21, 1
      %s56 = smul.u32 %s55, 4
      %s57 = sadd.s32 %s28, 1
      %s58 = smul.u32 %s57, 4
      %s59 = ssub.s32 %s56, %s58
      %p60 = scmp.eq.s32.totalorder %s59, 0
      %s62 = sadd.s32 %s61, 1
      %s63 = scalar_select %p60, %s61, %s62
      %p66 = pneg %p60
      %p67 = scmp.eq.s32.totalorder %s21, 2
      %p68 = por %p66, %p67
      %p69 = scmp.ne.s32.totalorder %s61, %s64
      %p70 = scmp.eq.s32.totalorder %s21, 0
      %p71 = por %p69, %p70
      %p72 = scmp.ne.s32.totalorder %s61, %s64
      %p73 = scmp.eq.s32.totalorder %s26, 2
      %p74 = por %p72, %p73
      %p75 = scmp.ne.s32.totalorder %s64, %s65
      %p76 = scmp.eq.s32.totalorder %s26, 0
      %p77 = por %p75, %p76
      %p78 = scmp.ne.s32.totalorder %s64, %s65
      %p79 = scmp.eq.s32.totalorder %s27, 2
      %p80 = por %p78, %p79
      %p82 = scmp.ne.s32.totalorder %s65, %s81
      %p83 = scmp.eq.s32.totalorder %s27, 0
      %p84 = por %p82, %p83
      %s86 = sadd.s32 %s85, 1
      %p89 = scmp.eq.s32.totalorder %s21, 2
      %p90 = scmp.ne.s32.totalorder %s85, %s87
      %p91 = scmp.eq.s32.totalorder %s21, 0
      %p92 = por %p90, %p91
      %p93 = scmp.ne.s32.totalorder %s85, %s87
      %p94 = scmp.eq.s32.totalorder %s26, 2
      %p95 = por %p93, %p94
      %p96 = scmp.ne.s32.totalorder %s87, %s88
      %p97 = scmp.eq.s32.totalorder %s26, 0
      %p98 = por %p96, %p97
      %p99 = scmp.ne.s32.totalorder %s87, %s88
      %p100 = scmp.eq.s32.totalorder %s27, 2
      %p101 = por %p99, %p100
      %p103 = scmp.ne.s32.totalorder %s88, %s102
      %p104 = scmp.eq.s32.totalorder %s27, 0
      %p105 = por %p103, %p104
      %s106 = ssub.s32 %s21, %s28
      %p107 = scmp.eq.s32.totalorder %s106, 0
      %s109 = sadd.s32 %s108, 1
      %s110 = scalar_select %p107, %s108, %s109
      %p113 = pneg %p107
      %p114 = scmp.eq.s32.totalorder %s21, 2
      %p115 = por %p113, %p114
      %p116 = scmp.ne.s32.totalorder %s108, %s111
      %p117 = scmp.eq.s32.totalorder %s21, 0
      %p118 = por %p116, %p117
      %p119 = scmp.ne.s32.totalorder %s108, %s111
      %p120 = scmp.eq.s32.totalorder %s26, 2
      %p121 = por %p119, %p120
      %p122 = scmp.ne.s32.totalorder %s111, %s112
      %p123 = scmp.eq.s32.totalorder %s26, 0
      %p124 = por %p122, %p123
      %p125 = scmp.ne.s32.totalorder %s111, %s112
      %p126 = scmp.eq.s32.totalorder %s27, 2
      %p127 = por %p125, %p126
      %p129 = scmp.ne.s32.totalorder %s112, %s128
      %p130 = scmp.eq.s32.totalorder %s27, 0
      %p131 = por %p129, %p130
      %s133 = sadd.s32 %s132, 1
      %p136 = scmp.eq.s32.totalorder %s21, 2
      %p137 = scmp.ne.s32.totalorder %s132, %s134
      %p138 = scmp.eq.s32.totalorder %s21, 0
      %p139 = por %p137, %p138
      %p140 = scmp.ne.s32.totalorder %s132, %s134
      %p141 = scmp.eq.s32.totalorder %s26, 2
      %p142 = por %p140, %p141
      %p143 = scmp.ne.s32.totalorder %s134, %s135
      %p144 = scmp.eq.s32.totalorder %s26, 0
      %p145 = por %p143, %p144
      %p146 = scmp.ne.s32.totalorder %s134, %s135
      %p147 = scmp.eq.s32.totalorder %s27, 2
      %p148 = por %p146, %p147
      %p150 = scmp.ne.s32.totalorder %s135, %s149
      %p151 = scmp.eq.s32.totalorder %s27, 0
      %p152 = por %p150, %p151
      %s154 = sadd.s32 %s153, 1
      %p157 = scmp.eq.s32.totalorder %s21, 2
      %p158 = scmp.ne.s32.totalorder %s153, %s155
      %p159 = scmp.eq.s32.totalorder %s21, 0
      %p160 = por %p158, %p159
      %p161 = scmp.ne.s32.totalorder %s153, %s155
      %p162 = scmp.eq.s32.totalorder %s26, 2
      %p163 = por %p161, %p162
      %p164 = scmp.ne.s32.totalorder %s155, %s156
      %p165 = scmp.eq.s32.totalorder %s26, 0
      %p166 = por %p164, %p165
      %p167 = scmp.ne.s32.totalorder %s155, %s156
      %p168 = scmp.eq.s32.totalorder %s27, 2
      %p169 = por %p167, %p168
      %p171 = scmp.ne.s32.totalorder %s156, %s170
      %p172 = scmp.eq.s32.totalorder %s27, 0
      %p173 = por %p171, %p172
      %p174 = scmp.le.s32.totalorder 1, %s21
      %p175 = scmp.lt.s32.totalorder %s21, 4
      %p176 = pnand %p174, %p175
      %p177 = pneg %p176
      // Predicated region
      $region9: #{tpu_custom_call.1} parent=5 // pred_check
        _
      $region10: #{tpu_custom_call.1} parent=5 // pred_check_branch
        %179 = sbr.rel (%p176) target = $region12
      $region11: #{tpu_custom_call.1} parent=5 // pred_region
        %s180 = ssub.s32 %s21, 1
        // Predicated region
        $region13: #{tpu_custom_call.1} parent=11 // pred_check
          %p181 = pneg %p98
        $region14: #{tpu_custom_call.1} parent=11 // pred_check_branch
          %183 = sbr.rel (%p181) target = $region16
        $region15: #{tpu_custom_call.1} parent=11 // pred_region
          _
        $region16: #{tpu_custom_call.1} parent=11 // pred_fallthru
          _
      $region12: #{tpu_custom_call.1} parent=5 // pred_fallthru
        _
      %p184 = scmp.lt.s32.totalorder %s21, 3
      // Predicated region
      $region17: #{tpu_custom_call.1} parent=5 // pred_check
        %p185 = pneg %p184
      $region18: #{tpu_custom_call.1} parent=5 // pred_check_branch
        %187 = sbr.rel (%p185) target = $region20
      $region19: #{tpu_custom_call.1} parent=5 // pred_region
        // Predicated region
        $region21: #{tpu_custom_call.1} parent=19 // pred_check
          %p188 = pneg %p41
        $region22: #{tpu_custom_call.1} parent=19 // pred_check_branch
          %190 = sbr.rel (%p188) target = $region24
        $region23: #{tpu_custom_call.1} parent=19 // pred_region
          %s191 = sand.u32 %s31, 1
          %s192 = scalar_lea.sflag [#allocation3], %s191
          %s193 = sand.u32 %s31, 1
          %s194 = smul.addr %s193, 16
          %s195 = scalar_lea.vmem [#allocation2], %s194
          %s196 = smul.u32 4, %s21
          %s197 = ssub.s32 13, %s196
          %p198 = scmp.lt.s32.totalorder %s197, 4
          %s199 = scalar_select %p198, %s197, 4
          %s200 = smul.u32 64, %s199
          %s202 = ssub.s32 256, %s200
          %203 = vsyncadd %s192, %s202
          %p204 = scmp.ne.s32.totalorder 0, %s200
          %s205 = smul.addr %s196, 64
          %s206 = scalar_lea.hbm %s0, %s205
          %s207 = smul.u32 %s199, 4
          %s208 = sshll.u32 %s207, 4
          %s209 = sshll.u32 %s195, 4
          %s210 = int_to_ptr.vmem [resolvable:$true] %s209
          %212 = dma.hbm_to_vmem [thread:$0]  (%p204), %s206, %s208, %s210, %s192
        $region24: #{tpu_custom_call.1} parent=19 // pred_fallthru
          _
        // Predicated region
        $region25: #{tpu_custom_call.1} parent=19 // pred_check
          %p213 = pneg %p71
        $region26: #{tpu_custom_call.1} parent=19 // pred_check_branch
          %215 = sbr.rel (%p213) target = $region28
        $region27: #{tpu_custom_call.1} parent=19 // pred_region
          %s216 = sand.u32 %s61, 1
          %s217 = scalar_lea.sflag [#allocation6], %s216
          %s218 = sand.u32 %s61, 1
          %s219 = smul.addr %s218, 4
          %s220 = scalar_lea.vmem [#allocation5], %s219
          %s221 = sadd.s32 %s21, 1
          %s222 = smul.u32 %s221, 4
          %s224 = ssub.s32 64, 64
          %225 = vsyncadd %s217, %s224
          %s226 = smul.addr %s222, 64
          %s227 = scalar_lea.hbm %s1, %s226
          %s229 = sshll.u32 %s220, 4
          %s230 = int_to_ptr.vmem [resolvable:$true] %s229
          %232 = dma.hbm_to_vmem [thread:$0]  %s227, 64, %s230, %s217
        $region28: #{tpu_custom_call.1} parent=19 // pred_fallthru
          _
      $region20: #{tpu_custom_call.1} parent=5 // pred_fallthru
        _
      %p233 = scmp.le.s32.totalorder 1, %s21
      %p234 = scmp.lt.s32.totalorder %s21, 4
      %p235 = pnand %p233, %p234
      %p236 = pneg %p235
      // Predicated region
      $region29: #{tpu_custom_call.1} parent=5 // pred_check
        _
      $region30: #{tpu_custom_call.1} parent=5 // pred_check_branch
        %238 = sbr.rel (%p235) target = $region32
      $region31: #{tpu_custom_call.1} parent=5 // pred_region
        %s239 = ssub.s32 %s21, 1
        %s240 = sand.u32 %s34, 1
        %s241 = scalar_lea.sflag [#allocation3], %s240
        %s242 = sand.u32 %s34, 1
        %s243 = smul.addr %s242, 16
        %s244 = scalar_lea.vmem [#allocation2], %s243
        // Predicated region
        $region33: #{tpu_custom_call.1} parent=31 // pred_check
          %p245 = pneg %p47
        $region34: #{tpu_custom_call.1} parent=31 // pred_check_branch
          %247 = sbr.rel (%p245) target = $region36
        $region35: #{tpu_custom_call.1} parent=31 // pred_region
          %248 = dma.done %s241, 256
        $region36: #{tpu_custom_call.1} parent=31 // pred_fallthru
          _
        %s249 = sand.u32 %s64, 1
        %s250 = scalar_lea.sflag [#allocation6], %s249
        %s251 = sand.u32 %s64, 1
        %s252 = smul.addr %s251, 4
        %s253 = scalar_lea.vmem [#allocation5], %s252
        // Predicated region
        $region37: #{tpu_custom_call.1} parent=31 // pred_check
          %p254 = pneg %p77
        $region38: #{tpu_custom_call.1} parent=31 // pred_check_branch
          %256 = sbr.rel (%p254) target = $region40
        $region39: #{tpu_custom_call.1} parent=31 // pred_region
          %257 = dma.done %s250, 64
        $region40: #{tpu_custom_call.1} parent=31 // pred_fallthru
          _
        %s258 = sand.u32 %s34, 1
        %s259 = scalar_lea.sflag [#allocation3], %s258
        %s260 = sand.u32 %s34, 1
        %s261 = smul.addr %s260, 16
        %s262 = scalar_lea.vmem [#allocation2], %s261
        %p263 = pneg %p47
        %p264 = pneg %p44
        %s265 = sand.u32 %s64, 1
        %s266 = scalar_lea.sflag [#allocation6], %s265
        %s267 = sand.u32 %s64, 1
        %s268 = smul.addr %s267, 4
        %s269 = scalar_lea.vmem [#allocation5], %s268
        %p270 = pneg %p77
        %p271 = pneg %p74
        %p272 = pneg %p98
        %p273 = pneg %p95
        %p274 = pneg %p124
        %p275 = pneg %p121
        %s276 = sand.u32 %s111, 1
        %s277 = scalar_lea.sflag [#allocation4], %s276
        %s278 = sand.u32 %s111, 1
        %s279 = smul.addr %s278, 64
        %s280 = scalar_lea.vmem [#allocation7], %s279
        %p281 = pneg %p145
        %p282 = pneg %p142
        %p283 = pneg %p166
        %p284 = pneg %p163
        %s285 = smul.u32 4, %s26
        %s286 = ssub.s32 13, %s285
        %p287 = scmp.lt.s32.totalorder %s286, 4
        %s288 = scalar_select %p287, %s286, 4
        %s289 = smul.u32 64, %s288
        %s290 = sadd.s32 %s26, 1
        %s291 = smul.u32 %s290, 4
        %s292 = smul.u32 4, %s26
        %v294 = vld [vmem:[%s244] sm:$0xff]
        %v295 = vld [vmem:[%s244 + $0x8] sm:$0xff]
        %v296 = vld [vmem:[%s253] sm:$0xf]
        %v299 = vunpack.c.l.b16 %v294
        %v300 = vunpack.c.h.b16 %v294
        %v301 = vunpack.c.l.b16 %v295
        %v302 = vunpack.c.h.b16 %v295
        %v303 = vpack.c.b16 %v299, %v299
        %v304 = vpack.c.b16 %v300, %v300
        %v305 = vpack.c.b16 %v301, %v301
        %v306 = vpack.c.b16 %v302, %v302
        %v307 = vld [vmem:[%s2] sm:$0xf]
        %v308 = vld [vmem:[%s2 + $0x4] sm:$0xf]
        %s309 = scalar_lea.vmem %s2, 8
        %v310 = vld [vmem:[%s309] sm:$0xf]
        %v311 = vld [vmem:[%s309 + $0x4] sm:$0xf]
        %v314 = vunpack.c.l.b16 %v310
        %v315 = vunpack.c.l.b16 %v311
        %v316 = vpack.c.b16 %v315, %v314
        %318 = vrot.lane.b32.xlu0 %v303, 127
        %v319 = vpop.permute.xlu0 %318
        %320 = vrot.lane.b32.xlu0 %v304, 127
        %v321 = vpop.permute.xlu0 %320
        %322 = vrot.lane.b32.xlu0 %v305, 127
        %v323 = vpop.permute.xlu0 %322
        %324 = vrot.lane.b32.xlu0 %v306, 127
        %v325 = vpop.permute.xlu0 %324
        %326 = vrot.lane.b32.xlu0 %v296, 127
        %v327 = vpop.permute.xlu0 %326
        %vm328 = vcmask 1039360
        %v329 = vsel %vm328, %v319, %v321
        %v330 = vsel %vm328, %v321, %v323
        %v331 = vsel %vm328, %v323, %v325
        %v332 = vsel %vm328, %v325, %v327
        %vm333 = vcmask 64512
        %v335 = vsel %vm333, %v316, 0
        %vm337 = vcmask 1043456
        %v339 = vsel %vm337, %v329, 0
        %v342 = vsel %vm337, %v330, 0
        %v345 = vsel %vm337, %v331, 0
        %v348 = vsel %vm337, %v332, 0
        %350 = vmatprep.subr.bf16.mxu0 %v342
        %351 = vmatpush1.bf16.msra.mxu0 %v339
        %352 = vmatprep.subr.bf16.mxu0 0
        %353 = vmatpush1.bf16.msra.mxu0 0
        %354 = vmatprep.subr.bf16.mxu0 0
        %355 = vmatpush1.bf16.msra.mxu0 0
        %356 = vmatprep.subr.bf16.mxu0 0
        %357 = vmatpush1.bf16.msra.mxu0 0
        %358 = vmatprep.subr.bf16.mxu0 0
        %359 = vmatpush1.bf16.msra.mxu0 0
        %360 = vmatprep.subr.bf16.mxu0 0
        %361 = vmatpush1.bf16.msra.mxu0 0
        %362 = vmatprep.subr.bf16.mxu0 0
        %363 = vmatpush1.bf16.msra.mxu0 0
        %364 = vmatprep.subr.bf16.mxu0 0
        %365 = vmatpush1.bf16.msra.mxu0 0
        %366 = vmatprep.subr.bf16.mxu0 0
        %367 = vmatpush1.bf16.msra.mxu0 0
        %368 = vmatprep.subr.bf16.mxu0 0
        %369 = vmatpush1.bf16.msra.mxu0 0
        %370 = vmatprep.subr.bf16.mxu0 0
        %371 = vmatpush1.bf16.msra.mxu0 0
        %372 = vmatprep.subr.bf16.mxu0 0
        %373 = vmatpush1.bf16.msra.mxu0 0
        %374 = vmatprep.subr.bf16.mxu0 0
        %375 = vmatpush1.bf16.msra.mxu0 0
        %376 = vmatprep.subr.bf16.mxu0 0
        %377 = vmatpush1.bf16.msra.mxu0 0
        %378 = vmatprep.subr.bf16.mxu0 0
        %379 = vmatpush1.bf16.msra.mxu0 0
        %380 = vmatprep.subr.bf16.mxu0 0
        %381 = vmatpush1.bf16.msra.mxu0 0
        %382 = vmatprep.mubr.bf16.mxu0 0
        %383 = vmatmul.mubr.bf16.gmra.mrb[0].mxu0 %v335
        %v384 = vpop.f32.mrb[0].mxu0
        %v385 = vadd.f32 0.0, %v384
        %v386 = vpop.f32.mrb[0].mxu0
        %v387 = vadd.f32 0.0, %v386
        %v388 = vpop.f32.mrb[0].mxu0
        %v389 = vadd.f32 0.0, %v388
        %v390 = vpop.f32.mrb[0].mxu0
        %v391 = vadd.f32 0.0, %v390
        %392 = vdwg.mxu0
        %393 = vmatprep.subr.bf16.mxu0 %v348
        %394 = vmatpush1.bf16.msra.mxu0 %v345
        %395 = vmatprep.subr.bf16.mxu0 0
        %396 = vmatpush1.bf16.msra.mxu0 0
        %397 = vmatprep.subr.bf16.mxu0 0
        %398 = vmatpush1.bf16.msra.mxu0 0
        %399 = vmatprep.subr.bf16.mxu0 0
        %400 = vmatpush1.bf16.msra.mxu0 0
        %401 = vmatprep.subr.bf16.mxu0 0
        %402 = vmatpush1.bf16.msra.mxu0 0
        %403 = vmatprep.subr.bf16.mxu0 0
        %404 = vmatpush1.bf16.msra.mxu0 0
        %405 = vmatprep.subr.bf16.mxu0 0
        %406 = vmatpush1.bf16.msra.mxu0 0
        %407 = vmatprep.subr.bf16.mxu0 0
        %408 = vmatpush1.bf16.msra.mxu0 0
        %409 = vmatprep.subr.bf16.mxu0 0
        %410 = vmatpush1.bf16.msra.mxu0 0
        %411 = vmatprep.subr.bf16.mxu0 0
        %412 = vmatpush1.bf16.msra.mxu0 0
        %413 = vmatprep.subr.bf16.mxu0 0
        %414 = vmatpush1.bf16.msra.mxu0 0
        %415 = vmatprep.subr.bf16.mxu0 0
        %416 = vmatpush1.bf16.msra.mxu0 0
        %417 = vmatprep.subr.bf16.mxu0 0
        %418 = vmatpush1.bf16.msra.mxu0 0
        %419 = vmatprep.subr.bf16.mxu0 0
        %420 = vmatpush1.bf16.msra.mxu0 0
        %421 = vmatprep.subr.bf16.mxu0 0
        %422 = vmatpush1.bf16.msra.mxu0 0
        %423 = vmatprep.subr.bf16.mxu0 0
        %424 = vmatpush1.bf16.msra.mxu0 0
        %425 = vmatprep.mubr.bf16.mxu0 0
        %426 = vmatmul.mubr.bf16.gmra.mrb[0].mxu0 %v335
        %v427 = vpop.f32.mrb[0].mxu0
        %v428 = vadd.f32 0.0, %v427
        %v429 = vpop.f32.mrb[0].mxu0
        %v430 = vadd.f32 0.0, %v429
        %v431 = vpop.f32.mrb[0].mxu0
        %v432 = vadd.f32 0.0, %v431
        %v433 = vpop.f32.mrb[0].mxu0
        %v434 = vadd.f32 0.0, %v433
        %435 = vdwg.mxu0
        %v438 = vunpack.c.l.b16 %v307
        %v439 = vunpack.c.l.b16 %v308
        %v440 = vpack.c.b16 %v439, %v438
        %v442 = vsel %vm333, %v440, 0
        %v445 = vsel %vm337, %v303, 0
        %v448 = vsel %vm337, %v304, 0
        %v451 = vsel %vm337, %v305, 0
        %v454 = vsel %vm337, %v306, 0
        %456 = vmatprep.subr.bf16.mxu0 %v448
        %457 = vmatpush1.bf16.msra.mxu0 %v445
        %458 = vmatprep.subr.bf16.mxu0 0
        %459 = vmatpush1.bf16.msra.mxu0 0
        %460 = vmatprep.subr.bf16.mxu0 0
        %461 = vmatpush1.bf16.msra.mxu0 0
        %462 = vmatprep.subr.bf16.mxu0 0
        %463 = vmatpush1.bf16.msra.mxu0 0
        %464 = vmatprep.subr.bf16.mxu0 0
        %465 = vmatpush1.bf16.msra.mxu0 0
        %466 = vmatprep.subr.bf16.mxu0 0
        %467 = vmatpush1.bf16.msra.mxu0 0
        %468 = vmatprep.subr.bf16.mxu0 0
        %469 = vmatpush1.bf16.msra.mxu0 0
        %470 = vmatprep.subr.bf16.mxu0 0
        %471 = vmatpush1.bf16.msra.mxu0 0
        %472 = vmatprep.subr.bf16.mxu0 0
        %473 = vmatpush1.bf16.msra.mxu0 0
        %474 = vmatprep.subr.bf16.mxu0 0
        %475 = vmatpush1.bf16.msra.mxu0 0
        %476 = vmatprep.subr.bf16.mxu0 0
        %477 = vmatpush1.bf16.msra.mxu0 0
        %478 = vmatprep.subr.bf16.mxu0 0
        %479 = vmatpush1.bf16.msra.mxu0 0
        %480 = vmatprep.subr.bf16.mxu0 0
        %481 = vmatpush1.bf16.msra.mxu0 0
        %482 = vmatprep.subr.bf16.mxu0 0
        %483 = vmatpush1.bf16.msra.mxu0 0
        %484 = vmatprep.subr.bf16.mxu0 0
        %485 = vmatpush1.bf16.msra.mxu0 0
        %486 = vmatprep.subr.bf16.mxu0 0
        %487 = vmatpush1.bf16.msra.mxu0 0
        %488 = vmatprep.mubr.bf16.mxu0 0
        %489 = vmatmul.mubr.bf16.gmra.mrb[0].mxu0 %v442
        %v490 = vpop.f32.mrb[0].mxu0
        %v491 = vadd.f32 %v385, %v490
        %v492 = vpop.f32.mrb[0].mxu0
        %v493 = vadd.f32 %v387, %v492
        %v494 = vpop.f32.mrb[0].mxu0
        %v495 = vadd.f32 %v389, %v494
        %v496 = vpop.f32.mrb[0].mxu0
        %v497 = vadd.f32 %v391, %v496
        %498 = vdwg.mxu0
        %499 = vmatprep.subr.bf16.mxu0 %v454
        %500 = vmatpush1.bf16.msra.mxu0 %v451
        %501 = vmatprep.subr.bf16.mxu0 0
        %502 = vmatpush1.bf16.msra.mxu0 0
        %503 = vmatprep.subr.bf16.mxu0 0
        %504 = vmatpush1.bf16.msra.mxu0 0
        %505 = vmatprep.subr.bf16.mxu0 0
        %506 = vmatpush1.bf16.msra.mxu0 0
        %507 = vmatprep.subr.bf16.mxu0 0
        %508 = vmatpush1.bf16.msra.mxu0 0
        %509 = vmatprep.subr.bf16.mxu0 0
        %510 = vmatpush1.bf16.msra.mxu0 0
        %511 = vmatprep.subr.bf16.mxu0 0
        %512 = vmatpush1.bf16.msra.mxu0 0
        %513 = vmatprep.subr.bf16.mxu0 0
        %514 = vmatpush1.bf16.msra.mxu0 0
        %515 = vmatprep.subr.bf16.mxu0 0
        %516 = vmatpush1.bf16.msra.mxu0 0
        %517 = vmatprep.subr.bf16.mxu0 0
        %518 = vmatpush1.bf16.msra.mxu0 0
        %519 = vmatprep.subr.bf16.mxu0 0
        %520 = vmatpush1.bf16.msra.mxu0 0
        %521 = vmatprep.subr.bf16.mxu0 0
        %522 = vmatpush1.bf16.msra.mxu0 0
        %523 = vmatprep.subr.bf16.mxu0 0
        %524 = vmatpush1.bf16.msra.mxu0 0
        %525 = vmatprep.subr.bf16.mxu0 0
        %526 = vmatpush1.bf16.msra.mxu0 0
        %527 = vmatprep.subr.bf16.mxu0 0
        %528 = vmatpush1.bf16.msra.mxu0 0
        %529 = vmatprep.subr.bf16.mxu0 0
        %530 = vmatpush1.bf16.msra.mxu0 0
        %531 = vmatprep.mubr.bf16.mxu0 0
        %532 = vmatmul.mubr.bf16.gmra.mrb[0].mxu0 %v442
        %v533 = vpop.f32.mrb[0].mxu0
        %v534 = vadd.f32 %v428, %v533
        %v535 = vpop.f32.mrb[0].mxu0
        %v536 = vadd.f32 %v430, %v535
        %v537 = vpop.f32.mrb[0].mxu0
        %v538 = vadd.f32 %v432, %v537
        %v539 = vpop.f32.mrb[0].mxu0
        %v540 = vadd.f32 %v434, %v539
        %541 = vdwg.mxu0
        %s542 = scalar_lea.vmem %s2, 16
        %v543 = vld [vmem:[%s542] sm:$0xf]
        %v544 = vld [vmem:[%s542 + $0x4] sm:$0xf]
        %v547 = vunpack.c.l.b16 %v543
        %v548 = vunpack.c.l.b16 %v544
        %v549 = vpack.c.b16 %v548, %v547
        %550 = vrot.lane.b32.xlu0 %v303, 126
        %v551 = vpop.permute.xlu0 %550
        %552 = vrot.lane.b32.xlu0 %v304, 126
        %v553 = vpop.permute.xlu0 %552
        %554 = vrot.lane.b32.xlu0 %v305, 126
        %v555 = vpop.permute.xlu0 %554
        %556 = vrot.lane.b32.xlu0 %v306, 126
        %v557 = vpop.permute.xlu0 %556
        %558 = vrot.lane.b32.xlu0 %v296, 126
        %v559 = vpop.permute.xlu0 %558
        %vm560 = vcmask 1031168
        %v561 = vsel %vm560, %v551, %v553
        %v562 = vsel %vm560, %v553, %v555
        %v563 = vsel %vm560, %v555, %v557
        %v564 = vsel %vm560, %v557, %v559
        %v566 = vsel %vm333, %v549, 0
        %v569 = vsel %vm337, %v561, 0
        %v572 = vsel %vm337, %v562, 0
        %v575 = vsel %vm337, %v563, 0
        %v578 = vsel %vm337, %v564, 0
        %580 = vmatprep.subr.bf16.mxu0 %v572
        %581 = vmatpush1.bf16.msra.mxu0 %v569
        %582 = vmatprep.subr.bf16.mxu0 0
        %583 = vmatpush1.bf16.msra.mxu0 0
        %584 = vmatprep.subr.bf16.mxu0 0
        %585 = vmatpush1.bf16.msra.mxu0 0
        %586 = vmatprep.subr.bf16.mxu0 0
        %587 = vmatpush1.bf16.msra.mxu0 0
        %588 = vmatprep.subr.bf16.mxu0 0
        %589 = vmatpush1.bf16.msra.mxu0 0
        %590 = vmatprep.subr.bf16.mxu0 0
        %591 = vmatpush1.bf16.msra.mxu0 0
        %592 = vmatprep.subr.bf16.mxu0 0
        %593 = vmatpush1.bf16.msra.mxu0 0
        %594 = vmatprep.subr.bf16.mxu0 0
        %595 = vmatpush1.bf16.msra.mxu0 0
        %596 = vmatprep.subr.bf16.mxu0 0
        %597 = vmatpush1.bf16.msra.mxu0 0
        %598 = vmatprep.subr.bf16.mxu0 0
        %599 = vmatpush1.bf16.msra.mxu0 0
        %600 = vmatprep.subr.bf16.mxu0 0
        %601 = vmatpush1.bf16.msra.mxu0 0
        %602 = vmatprep.subr.bf16.mxu0 0
        %603 = vmatpush1.bf16.msra.mxu0 0
        %604 = vmatprep.subr.bf16.mxu0 0
        %605 = vmatpush1.bf16.msra.mxu0 0
        %606 = vmatprep.subr.bf16.mxu0 0
        %607 = vmatpush1.bf16.msra.mxu0 0
        %608 = vmatprep.subr.bf16.mxu0 0
        %609 = vmatpush1.bf16.msra.mxu0 0
        %610 = vmatprep.subr.bf16.mxu0 0
        %611 = vmatpush1.bf16.msra.mxu0 0
        %612 = vmatprep.mubr.bf16.mxu0 0
        %613 = vmatmul.mubr.bf16.gmra.mrb[0].mxu0 %v566
        %v614 = vpop.f32.mrb[0].mxu0
        %v615 = vadd.f32 0.0, %v614
        %v616 = vpop.f32.mrb[0].mxu0
        %v617 = vadd.f32 0.0, %v616
        %v618 = vpop.f32.mrb[0].mxu0
        %v619 = vadd.f32 0.0, %v618
        %v620 = vpop.f32.mrb[0].mxu0
        %v621 = vadd.f32 0.0, %v620
        %622 = vdwg.mxu0
        %623 = vmatprep.subr.bf16.mxu0 %v578
        %624 = vmatpush1.bf16.msra.mxu0 %v575
        %625 = vmatprep.subr.bf16.mxu0 0
        %626 = vmatpush1.bf16.msra.mxu0 0
        %627 = vmatprep.subr.bf16.mxu0 0
        %628 = vmatpush1.bf16.msra.mxu0 0
        %629 = vmatprep.subr.bf16.mxu0 0
        %630 = vmatpush1.bf16.msra.mxu0 0
        %631 = vmatprep.subr.bf16.mxu0 0
        %632 = vmatpush1.bf16.msra.mxu0 0
        %633 = vmatprep.subr.bf16.mxu0 0
        %634 = vmatpush1.bf16.msra.mxu0 0
        %635 = vmatprep.subr.bf16.mxu0 0
        %636 = vmatpush1.bf16.msra.mxu0 0
        %637 = vmatprep.subr.bf16.mxu0 0
        %638 = vmatpush1.bf16.msra.mxu0 0
        %639 = vmatprep.subr.bf16.mxu0 0
        %640 = vmatpush1.bf16.msra.mxu0 0
        %641 = vmatprep.subr.bf16.mxu0 0
        %642 = vmatpush1.bf16.msra.mxu0 0
        %643 = vmatprep.subr.bf16.mxu0 0
        %644 = vmatpush1.bf16.msra.mxu0 0
        %645 = vmatprep.subr.bf16.mxu0 0
        %646 = vmatpush1.bf16.msra.mxu0 0
        %647 = vmatprep.subr.bf16.mxu0 0
        %648 = vmatpush1.bf16.msra.mxu0 0
        %649 = vmatprep.subr.bf16.mxu0 0
        %650 = vmatpush1.bf16.msra.mxu0 0
        %651 = vmatprep.subr.bf16.mxu0 0
        %652 = vmatpush1.bf16.msra.mxu0 0
        %653 = vmatprep.subr.bf16.mxu0 0
        %654 = vmatpush1.bf16.msra.mxu0 0
        %655 = vmatprep.mubr.bf16.mxu0 0
        %656 = vmatmul.mubr.bf16.gmra.mrb[0].mxu0 %v566
        %v657 = vpop.f32.mrb[0].mxu0
        %v658 = vadd.f32 0.0, %v657
        %v659 = vpop.f32.mrb[0].mxu0
        %v660 = vadd.f32 0.0, %v659
        %v661 = vpop.f32.mrb[0].mxu0
        %v662 = vadd.f32 0.0, %v661
        %v663 = vpop.f32.mrb[0].mxu0
        %v664 = vadd.f32 0.0, %v663
        %665 = vdwg.mxu0
        %v666 = vadd.f32 %v491, %v615
        %v667 = vadd.f32 %v493, %v617
        %v668 = vadd.f32 %v534, %v658
        %v669 = vadd.f32 %v536, %v660
        %v670 = vadd.f32 %v495, %v619
        %v671 = vadd.f32 %v497, %v621
        %v672 = vadd.f32 %v538, %v662
        %v673 = vadd.f32 %v540, %v664
        %s674 = smul.u32 %s26, 512
        %v675 = vlaneseq
        %v676 = vand.u32 %v675, 127
        %v677 = vadd.s32 %v676, 128
        %v678 = vadd.s32 %v676, 256
        %v679 = vadd.s32 %v676, 384
        %v680 = vstv %s674
        %v681 = vadd.s32 %v680, %v676
        %v682 = vadd.s32 %v680, %v677
        %v683 = vadd.s32 %v680, %v678
        %v684 = vadd.s32 %v680, %v679
        %vm685 = vcmp.lt.s32.totalorder %v681, 0
        %v686 = vsub.s32 0, %v681
        %v687 = vsel %vm685, %v686, %v681
        %v688 = vmul.u32.u64.compose %v687, 3652862551
        %v689 = vextract.low.u32 %v688
        %v690 = vextract.high.u32 %v688
        %v691 = vshrl.u32 %v690, 9
        %v692 = vmul.u32 %v691, 602
        %v693 = vsub.s32 %v687, %v692
        %v694 = vsub.s32 0, %v693
        %v695 = vsel %vm685, %v694, %v693
        %vm696 = vcmp.lt.s32.totalorder %v682, 0
        %v697 = vsub.s32 0, %v682
        %v698 = vsel %vm696, %v697, %v682
        %v699 = vmul.u32.u64.compose %v698, 3652862551
        %v700 = vextract.low.u32 %v699
        %v701 = vextract.high.u32 %v699
        %v702 = vshrl.u32 %v701, 9
        %v703 = vmul.u32 %v702, 602
        %v704 = vsub.s32 %v698, %v703
        %v705 = vsub.s32 0, %v704
        %v706 = vsel %vm696, %v705, %v704
        %vm707 = vcmp.lt.s32.totalorder %v683, 0
        %v708 = vsub.s32 0, %v683
        %v709 = vsel %vm707, %v708, %v683
        %v710 = vmul.u32.u64.compose %v709, 3652862551
        %v711 = vextract.low.u32 %v710
        %v712 = vextract.high.u32 %v710
        %v713 = vshrl.u32 %v712, 9
        %v714 = vmul.u32 %v713, 602
        %v715 = vsub.s32 %v709, %v714
        %v716 = vsub.s32 0, %v715
        %v717 = vsel %vm707, %v716, %v715
        %vm718 = vcmp.lt.s32.totalorder %v684, 0
        %v719 = vsub.s32 0, %v684
        %v720 = vsel %vm718, %v719, %v684
        %v721 = vmul.u32.u64.compose %v720, 3652862551
        %v722 = vextract.low.u32 %v721
        %v723 = vextract.high.u32 %v721
        %v724 = vshrl.u32 %v723, 9
        %v725 = vmul.u32 %v724, 602
        %v726 = vsub.s32 %v720, %v725
        %v727 = vsub.s32 0, %v726
        %v728 = vsel %vm718, %v727, %v726
        %vm729 = vcmp.ne.s32.totalorder %v695, 0
        %vm730 = vcmp.ne.s32.totalorder %v706, 0
        %vm731 = vcmp.ne.s32.totalorder %v717, 0
        %vm732 = vcmp.ne.s32.totalorder %v728, 0
        %vm733 = vcmp.lt.s32.totalorder %v695, 0
        %vm734 = vcmp.lt.s32.totalorder %v706, 0
        %vm735 = vcmp.lt.s32.totalorder %v717, 0
        %vm736 = vcmp.lt.s32.totalorder %v728, 0
        %vm737 = vmand %vm733, %vm729
        %vm738 = vmand %vm734, %vm730
        %vm739 = vmand %vm735, %vm731
        %vm740 = vmand %vm736, %vm732
        %v741 = vadd.s32 %v695, 602
        %v742 = vadd.s32 %v706, 602
        %v743 = vadd.s32 %v717, 602
        %v744 = vadd.s32 %v728, 602
        %v745 = vsel %vm737, %v741, %v695
        %v746 = vsel %vm738, %v742, %v706
        %v747 = vsel %vm739, %v743, %v717
        %v748 = vsel %vm740, %v744, %v728
        %vm749 = vcmp.lt.s32.totalorder %v745, 600
        %vm750 = vcmp.lt.s32.totalorder %v746, 600
        %vm751 = vcmp.lt.s32.totalorder %v747, 600
        %vm752 = vcmp.lt.s32.totalorder %v748, 600
        %v753 = vsel %vm749, 1, 0
        %v754 = vsel %vm750, 1, 0
        %v755 = vsel %vm751, 1, 0
        %v756 = vsel %vm752, 1, 0
        %vm757 = vcmp.eq.s32.totalorder %v753, 1
        %vm758 = vcmp.eq.s32.totalorder %v754, 1
        %vm759 = vcmp.eq.s32.totalorder %v755, 1
        %vm760 = vcmp.eq.s32.totalorder %v756, 1
        %v761 = vsel %vm757, %v666, 0.0
        %v762 = vsel %vm758, %v667, 0.0
        %v763 = vsel %vm759, %v668, 0.0
        %v764 = vsel %vm760, %v669, 0.0
        %v765 = vsel %vm757, %v670, 0.0
        %v766 = vsel %vm758, %v671, 0.0
        %v767 = vsel %vm759, %v672, 0.0
        %v768 = vsel %vm760, %v673, 0.0
        %p769 = scmp.eq.s32.totalorder %s26, 0
        // Predicated region
        $region41: #{tpu_custom_call.1} parent=31 // pred_check
          %p770 = pneg %p769
        $region42: #{tpu_custom_call.1} parent=31 // pred_check_branch
          %772 = sbr.rel (%p770) target = $region44
        $region43: #{tpu_custom_call.1} parent=31 // pred_region
          %vm773 = vcmask 7168
          %774 = vst.msk [vmem:[%s4] sm:$0xff] %vm773, 0.0
          %775 = vst.msk [vmem:[%s4 + $0x8] sm:$0xff] %vm773, 0.0
          %776 = vst.msk [vmem:[%s5] sm:$0xff] %vm773, 0.0
          %777 = vst.msk [vmem:[%s5 + $0x8] sm:$0xff] %vm773, 0.0
        $region44: #{tpu_custom_call.1} parent=31 // pred_fallthru
          _
        %v778 = vld [vmem:[%s4] sm:$0xff]
        %v779 = vld [vmem:[%s4 + $0x8] sm:$0xff]
        %v780 = vadd.f32 %v761, %v762
        %v781 = vadd.f32 %v780, %v763
        %v782 = vadd.f32 %v781, %v764
        %783 = vadd.xlane.f32.xlu0 %v782
        %v784 = vpop.xlane.xlu0 %783
        %v785 = vadd.f32 %v765, %v766
        %v786 = vadd.f32 %v785, %v767
        %v787 = vadd.f32 %v786, %v768
        %788 = vadd.xlane.f32.xlu0 %v787
        %v789 = vpop.xlane.xlu0 %788
        %v790 = vadd.f32 %v778, %v784
        %v791 = vadd.f32 %v779, %v789
        %vm792 = vcmask 7168
        %793 = vst.msk [vmem:[%s4] sm:$0xff] %vm792, %v790
        %794 = vst.msk [vmem:[%s4 + $0x8] sm:$0xff] %vm792, %v791
        %v795 = vld [vmem:[%s5] sm:$0xff]
        %v796 = vld [vmem:[%s5 + $0x8] sm:$0xff]
        %v797 = vmul.f32 %v761, %v761
        %v798 = vmul.f32 %v762, %v762
        %v799 = vmul.f32 %v763, %v763
        %v800 = vmul.f32 %v764, %v764
        %v801 = vmul.f32 %v765, %v765
        %v802 = vmul.f32 %v766, %v766
        %v803 = vmul.f32 %v767, %v767
        %v804 = vmul.f32 %v768, %v768
        %v805 = vadd.f32 %v797, %v798
        %v806 = vadd.f32 %v805, %v799
        %v807 = vadd.f32 %v806, %v800
        %808 = vadd.xlane.f32.xlu0 %v807
        %v809 = vpop.xlane.xlu0 %808
        %v810 = vadd.f32 %v801, %v802
        %v811 = vadd.f32 %v810, %v803
        %v812 = vadd.f32 %v811, %v804
        %813 = vadd.xlane.f32.xlu0 %v812
        %v814 = vpop.xlane.xlu0 %813
        %v815 = vadd.f32 %v795, %v809
        %v816 = vadd.f32 %v796, %v814
        %817 = vst.msk [vmem:[%s5] sm:$0xff] %vm792, %v815
        %818 = vst.msk [vmem:[%s5 + $0x8] sm:$0xff] %vm792, %v816
        %819 = vst [vmem:[%s280] sm:$0xff] %v666
        %820 = vst [vmem:[%s280 + $0x8] sm:$0xff] %v667
        %821 = vst [vmem:[%s280 + $0x10] sm:$0xff] %v668
        %822 = vst [vmem:[%s280 + $0x18] sm:$0xff] %v669
        %823 = vst [vmem:[%s280 + $0x20] sm:$0xff] %v670
        %824 = vst [vmem:[%s280 + $0x28] sm:$0xff] %v671
        %825 = vst [vmem:[%s280 + $0x30] sm:$0xff] %v672
        %826 = vst [vmem:[%s280 + $0x38] sm:$0xff] %v673
        %s827 = sand.u32 %s111, 1
        %s828 = scalar_lea.sflag [#allocation4], %s827
        %s829 = sand.u32 %s111, 1
        %s830 = smul.addr %s829, 64
        %s831 = scalar_lea.vmem [#allocation7], %s830
        // Predicated region
        $region45: #{tpu_custom_call.1} parent=31 // pred_check
          %p832 = pneg %p121
        $region46: #{tpu_custom_call.1} parent=31 // pred_check_branch
          %834 = sbr.rel (%p832) target = $region48
        $region47: #{tpu_custom_call.1} parent=31 // pred_region
          %s835 = smul.u32 4, %s26
          %s837 = ssub.s32 1024, 1024
          %838 = vsyncadd %s828, %s837
          %s839 = smul.addr %s835, 128
          %s840 = scalar_lea.hbm %s3, %s839
          %s841 = sshll.u32 %s831, 4
          %s842 = int_to_ptr.vmem [resolvable:$true] %s841
          %847 = dma.vmem_to_hbm [thread:$0]  %s842, 1024, %s840, %s828, 512, 1536, 32
        $region48: #{tpu_custom_call.1} parent=31 // pred_fallthru
          _
        // Predicated region
        $region49: #{tpu_custom_call.1} parent=31 // pred_check
          %p848 = pneg %p142
        $region50: #{tpu_custom_call.1} parent=31 // pred_check_branch
          %850 = sbr.rel (%p848) target = $region52
        $region51: #{tpu_custom_call.1} parent=31 // pred_region
          _
        $region52: #{tpu_custom_call.1} parent=31 // pred_fallthru
          _
        // Predicated region
        $region53: #{tpu_custom_call.1} parent=31 // pred_check
          %p851 = pneg %p163
        $region54: #{tpu_custom_call.1} parent=31 // pred_check_branch
          %853 = sbr.rel (%p851) target = $region56
        $region55: #{tpu_custom_call.1} parent=31 // pred_region
          _
        $region56: #{tpu_custom_call.1} parent=31 // pred_fallthru
          _
        // Predicated region
        $region57: #{tpu_custom_call.1} parent=31 // pred_check
          %p854 = pneg %p142
        $region58: #{tpu_custom_call.1} parent=31 // pred_check_branch
          %856 = sbr.rel (%p854) target = $region60
        $region59: #{tpu_custom_call.1} parent=31 // pred_region
          _
        $region60: #{tpu_custom_call.1} parent=31 // pred_fallthru
          _
        // Predicated region
        $region61: #{tpu_custom_call.1} parent=31 // pred_check
          %p857 = pneg %p163
        $region62: #{tpu_custom_call.1} parent=31 // pred_check_branch
          %859 = sbr.rel (%p857) target = $region64
        $region63: #{tpu_custom_call.1} parent=31 // pred_region
          _
        $region64: #{tpu_custom_call.1} parent=31 // pred_fallthru
          _
      $region32: #{tpu_custom_call.1} parent=5 // pred_fallthru
        _
      %p860 = scmp.le.s32.totalorder 2, %s21
      // Predicated region
      $region65: #{tpu_custom_call.1} parent=5 // pred_check
        %p861 = pneg %p860
      $region66: #{tpu_custom_call.1} parent=5 // pred_check_branch
        %863 = sbr.rel (%p861) target = $region68
      $region67: #{tpu_custom_call.1} parent=5 // pred_region
        %s864 = ssub.s32 %s21, 2
        // Predicated region
        $region69: #{tpu_custom_call.1} parent=67 // pred_check
          %p865 = pneg %p127
        $region70: #{tpu_custom_call.1} parent=67 // pred_check_branch
          %867 = sbr.rel (%p865) target = $region72
        $region71: #{tpu_custom_call.1} parent=67 // pred_region
          %s868 = sand.u32 %s112, 1
          %s869 = scalar_lea.sflag [#allocation4], %s868
          %s870 = sand.u32 %s112, 1
          %s871 = smul.addr %s870, 64
          %s872 = scalar_lea.vmem [#allocation7], %s871
          %873 = dma.done %s869, 1024
        $region72: #{tpu_custom_call.1} parent=67 // pred_fallthru
          _
      $region68: #{tpu_custom_call.1} parent=5 // pred_fallthru
        _
    $region6: #{tpu_custom_call.1} parent=1 // loop_footer
      %s25 = sadd.s32 1, %s21
    $region7: #{tpu_custom_call.1} parent=1 // loop_footer_branch
      %20 = sbr.rel target = $region3
    $region8: #{tpu_custom_call.1} parent=1 // loop_exit
      _
    %874 = vsyncpa [#allocation3], 1
    %s875 = scalar_lea.sflag [#allocation3], 1
    %876 = vsyncpa %s875, 1
    %877 = vsyncpa [#allocation6], 1
    %s878 = scalar_lea.sflag [#allocation6], 1
    %879 = vsyncpa %s878, 1
    %880 = vsyncpa [#allocation4], 1
    %s881 = scalar_lea.sflag [#allocation4], 1
    %882 = vsyncpa %s881, 1

</llo_original>
